<compile_context>
chip_gen: v5e
topology: v5e:2x2
jax: 0.10.0
libtpu: 0.0.40
codegen_flags: <defaults>
</compile_context>

<pallas_src>
import functools
import math

import jax
import jax.numpy as jnp
import numpy as np
from jax import lax
from jax.experimental import pallas as pl
from jax.experimental.pallas import tpu as pltpu


_LANE = 128      # lane width  (last dim)
_SUBLANE = 8     # sublane width (second-to-last dim)

_ACTIVATIONS = {
    "relu": lambda v: jnp.maximum(v, 0.0),
    "tanh": jnp.tanh,
    "softplus": lambda v: jnp.log1p(jnp.exp(v)),   # only traced if selected
}


def _round_up(x, m):
    return (x + m - 1) // m * m


# ---------------------------------------------------------------------------
# Fused kernel: input projection + sequential recurrence, chunked over time
# ---------------------------------------------------------------------------
def _ctrnn_fused_kernel(x_ref, wi_ref, b_ref, noise_ref, wh_ref, out_ref,
                        h_ref, *, alpha, chunk, activation):
    """One grid step == `chunk` RNN time steps for one batch tile.

    Block shapes: x (chunk, bt, I) bf16, noise/out (chunk, bt, Hp) f32,
    Wi (I, Hp) bf16, Wh (Hp, Hp) bf16, bias (1, Hp) f32.
    The hidden state is carried across time chunks in VMEM scratch (bt, Hp) f32.
    """
    # Fresh hidden state at the start of every batch tile (time-chunk 0).
    @pl.when(pl.program_id(1) == 0)
    def _():
        h_ref[...] = jnp.zeros_like(h_ref)           # CTRNN.init_hidden

    act = _ACTIVATIONS[activation]
    oma = jnp.float32(1.0 - alpha)
    a = jnp.float32(alpha)
    bias = b_ref[...]                                # (1, Hp) f32 — tiny, hoisted

    def body(t, h):
        # Both matmuls stream their bf16 operands straight from the VMEM refs
        # (no vreg-resident Wh across the unrolled loop); accumulate in f32.
        pre = (jnp.dot(x_ref[t], wi_ref[...], preferred_element_type=jnp.float32)
               + bias
               + noise_ref[t]
               + jnp.dot(h.astype(jnp.bfloat16), wh_ref[...],
                         preferred_element_type=jnp.float32))
        h_new = oma * h + a * act(pre)
        out_ref[t] = h_new
        return h_new

    h_ref[...] = lax.fori_loop(0, chunk, body, h_ref[...], unroll=True)


# ---------------------------------------------------------------------------
# Wrapper
# ---------------------------------------------------------------------------
def _pad_cast_3d(a, shape, dtype):
    if a.shape == shape:
        return a.astype(dtype)
    out = jnp.zeros(shape, dtype)
    return out.at[: a.shape[0], : a.shape[1], : a.shape[2]].set(a.astype(dtype))


def _pad_cast_2d(a, shape, dtype):
    if a.shape == shape:
        return a.astype(dtype)
    out = jnp.zeros(shape, dtype)
    return out.at[: a.shape[0], : a.shape[1]].set(a.astype(dtype))


def _pick_chunk(T, bt, I, Hp, max_chunk, block_budget_bytes):
    """Biggest time chunk whose double-buffered blocks fit the budget, then
    balanced so the padded sequence length wastes < one chunk."""
    per_step = 2 * bt * (2 * I + 4 * Hp + 4 * Hp)   # 2x-buffered x(bf16)+noise+out(f32)
    ct_max = max(1, min(max_chunk, T, block_budget_bytes // max(per_step, 1)))
    n_chunks = -(-T // ct_max)
    ct = -(-T // n_chunks)
    return ct, n_chunks


def ctrnn_forward(x, noise, wi, bi, wh, bh, *, alpha, nonlinearity="relu",
                  max_chunk=64, block_budget_bytes=16 << 20,
                  vmem_limit_bytes=48 << 20):
    """Run the CTRNN over the whole sequence.

    x: (T, B, I), noise: (T, B, H) (= sigma * randn per step),
    wi: (I, H) (input2hs weight^T), bi/bh: (H,), wh: (H, H) (h2h weight^T).
    Returns (output (T,B,H), final_hidden (B,H)) — same as the PyTorch forward.
    """
    T, B, I = x.shape
    H = wh.shape[1]
    Bp = _round_up(B, _SUBLANE)          # sublane-dense batch
    Hp = _round_up(H, _LANE)             # lane-dense hidden

    # Batch tiles: lets v7x's second TensorCore take half the batch
    # ("parallel" axis); a size-1 axis on small batches / 1-TC chips.
    n_btiles = 2 if (Bp >= 2 * _SUBLANE and (Bp // 2) % _SUBLANE == 0) else 1
    bt = Bp // n_btiles

    ct, n_chunks = _pick_chunk(T, bt, I, Hp, max_chunk, block_budget_bytes)
    Tp = ct * n_chunks                   # time padded to a chunk multiple

    f32, bf16 = jnp.float32, jnp.bfloat16
    x_p = _pad_cast_3d(x, (Tp, Bp, I), bf16)
    noise_p = _pad_cast_3d(noise, (Tp, Bp, Hp), f32)
    wi_p = _pad_cast_2d(wi, (I, Hp), bf16)
    wh_p = _pad_cast_2d(wh, (Hp, Hp), bf16)
    b_p = _pad_cast_2d((bi + bh).reshape(1, H).astype(f32), (1, Hp), f32)

    kernel = functools.partial(
        _ctrnn_fused_kernel, alpha=float(alpha), chunk=ct,
        activation=nonlinearity)

    out_p = pl.pallas_call(
        kernel,
        out_shape=jax.ShapeDtypeStruct((Tp, Bp, Hp), f32),
        grid_spec=pltpu.PrefetchScalarGridSpec(
            num_scalar_prefetch=0,
            grid=(n_btiles, n_chunks),
            in_specs=[
                pl.BlockSpec((ct, bt, I), lambda b, c: (c, b, 0)),    # x chunk
                pl.BlockSpec((I, Hp), lambda b, c: (0, 0)),           # Wi (resident)
                pl.BlockSpec((1, Hp), lambda b, c: (0, 0)),           # bi + bh
                pl.BlockSpec((ct, bt, Hp), lambda b, c: (c, b, 0)),   # noise chunk
                pl.BlockSpec((Hp, Hp), lambda b, c: (0, 0)),          # Wh (resident)
            ],
            out_specs=pl.BlockSpec((ct, bt, Hp), lambda b, c: (c, b, 0)),
            scratch_shapes=[pltpu.VMEM((bt, Hp), f32)],               # carried hidden
        ),
        compiler_params=pltpu.CompilerParams(
            dimension_semantics=("parallel", "arbitrary"),
            vmem_limit_bytes=vmem_limit_bytes),
    )(x_p, wi_p, b_p, noise_p, wh_p)

    out = out_p
    if (Tp, Bp, Hp) != (T, B, H):        # skip the extra HBM pass when aligned
        out = out[:T, :B, :H]
    return out, out[-1]


# ---------------------------------------------------------------------------
# Plain-JAX reference of the PyTorch forward, for validation
# ---------------------------------------------------------------------------
def ctrnn_reference(x, noise, wi, bi, wh, bh, *, alpha, nonlinearity="relu"):
    act = {"relu": lambda v: jnp.maximum(v, 0.0),
           "tanh": jnp.tanh,
           "softplus": jax.nn.softplus}[nonlinearity]
    T, B, _ = x.shape
    H = wh.shape[0]
    h = jnp.zeros((B, H), jnp.float32)
    outs = []
    for t in range(T):
        pre = x[t] @ wi + bi + h @ wh + bh + noise[t]
        h = (1.0 - alpha) * h + alpha * act(pre)
        outs.append(h)
    return jnp.stack(outs, 0), h


if __name__ == "__main__":
    # Hyperparameters mirroring the module defaults
    dt, tau = 20.0, 100.0
    alpha = dt / tau                     # 0.2
    sigma_rec = 0.05
    sigma = math.sqrt(2.0 * alpha) * sigma_rec

    def make_case(key, T, B, I, H):
        k_x, k_wi, k_bi, k_bh, k_noise = jax.random.split(key, 5)
        x = jax.random.normal(k_x, (T, B, I), dtype=jnp.float32)
        bound_i = 1.0 / math.sqrt(I)
        wi = jax.random.uniform(k_wi, (I, H), jnp.float32, -bound_i, bound_i)  # W^T
        bi = jax.random.uniform(k_bi, (H,), jnp.float32, -bound_i, bound_i)
        wh = 0.5 * jnp.eye(H, dtype=jnp.float32)   # reset_parameters(): 0.5 * eye
        bound_h = 1.0 / math.sqrt(H)
        bh = jax.random.uniform(k_bh, (H,), jnp.float32, -bound_h, bound_h)
        noise = sigma * jax.random.normal(k_noise, (T, B, H), dtype=jnp.float32)
        return x, noise, wi, bi, wh, bh

    key = jax.random.PRNGKey(0)
    k1, k2 = jax.random.split(key)

    # Case 1: default relu nonlinearity.
    T, B, I, H = 8, 4, 16, 32
    args1 = make_case(k1, T, B, I, H)
    out, h_fin = ctrnn_forward(*args1, alpha=alpha)
    out = jax.block_until_ready(out)
    h_fin = jax.block_until_ready(h_fin)
    out_r, h_r = ctrnn_reference(*args1, alpha=alpha)
    np.testing.assert_allclose(np.asarray(out), np.asarray(out_r), rtol=1e-2, atol=1e-2)
    np.testing.assert_allclose(np.asarray(h_fin), np.asarray(h_r), rtol=1e-2, atol=1e-2)
    assert out.shape == (T, B, H) and h_fin.shape == (B, H)

    # Case 2: awkward (prime) T + unaligned batch + tanh — exercises the
    # time-padding path (no chunk=1 collapse) and the activation switch.
    T2, B2, I2, H2 = 7, 3, 16, 32
    args2 = make_case(k2, T2, B2, I2, H2)
    out2, h2 = ctrnn_forward(*args2, alpha=alpha, nonlinearity="tanh", max_chunk=4)
    out2 = jax.block_until_ready(out2)
    h2 = jax.block_until_ready(h2)
    out2_r, h2_r = ctrnn_reference(*args2, alpha=alpha, nonlinearity="tanh")
    np.testing.assert_allclose(np.asarray(out2), np.asarray(out2_r), rtol=1e-2, atol=1e-2)
    np.testing.assert_allclose(np.asarray(h2), np.asarray(h2_r), rtol=1e-2, atol=1e-2)
    assert out2.shape == (T2, B2, H2) and h2.shape == (B2, H2)

    print("KERNEL_OK")
</pallas_src>

<mosaic_0001>
module attributes {stable_mosaic.version = 11 : i64} {
  func.func @_ctrnn_fused_kernel(%arg0: i32, %arg1: i32, %arg2: memref<8x8x16xbf16, #tpu.memory_space<vmem>>, %arg3: memref<16x128xbf16, #tpu.memory_space<vmem>>, %arg4: memref<1x128xf32, #tpu.memory_space<vmem>>, %arg5: memref<8x8x128xf32, #tpu.memory_space<vmem>>, %arg6: memref<128x128xbf16, #tpu.memory_space<vmem>>, %arg7: memref<8x8x128xf32, #tpu.memory_space<vmem>>, %arg8: memref<8x128xf32, #tpu.memory_space<vmem>>) attributes {dimension_semantics = [#tpu.dimension_semantics<parallel>, #tpu.dimension_semantics<arbitrary>], iteration_bounds = array<i64: 1, 1>, scalar_prefetch = 0 : i64, scratch_operands = 1 : i64, tpu.core_type = #tpu.core_type<tc>, window_params = [{transform_indices = @transform_0, window_bounds = array<i64: 8, 8, 16>}, {pipeline_mode = #tpu.pipeline_mode<synchronous>, transform_indices = @transform_1, window_bounds = array<i64: 16, 128>}, {pipeline_mode = #tpu.pipeline_mode<synchronous>, transform_indices = @transform_2, window_bounds = array<i64: 1, 128>}, {transform_indices = @transform_3, window_bounds = array<i64: 8, 8, 128>}, {pipeline_mode = #tpu.pipeline_mode<synchronous>, transform_indices = @transform_4, window_bounds = array<i64: 128, 128>}, {transform_indices = @transform_5, window_bounds = array<i64: 8, 8, 128>}]} {
    %c0_i32 = arith.constant 0 : i32
    %0 = arith.cmpi eq, %arg1, %c0_i32 : i32
    %1 = arith.extui %0 : i1 to i32
    %c0_i32_0 = arith.constant 0 : i32
    %2 = arith.cmpi ne, %1, %c0_i32_0 : i32
    scf.if %2 {
      %cst_112 = arith.constant 0.000000e+00 : f32
      %214 = vector.broadcast %cst_112 : f32 to vector<8x128xf32>
      %c0_113 = arith.constant 0 : index
      %c0_114 = arith.constant 0 : index
      %215 = vector.load %arg8[%c0_113, %c0_114] : memref<8x128xf32, #tpu.memory_space<vmem>>, vector<8x128xf32>
      tpu.vector_store %arg8[%c0_113, %c0_114], %214 {strides = array<i32>} : memref<8x128xf32, #tpu.memory_space<vmem>>, vector<8x128xf32>,
    } else {
    }
    %c0 = arith.constant 0 : index
    %c0_1 = arith.constant 0 : index
    %3 = vector.load %arg4[%c0, %c0_1] : memref<1x128xf32, #tpu.memory_space<vmem>>, vector<1x128xf32>
    %c0_2 = arith.constant 0 : index
    %c0_3 = arith.constant 0 : index
    %4 = vector.load %arg8[%c0_2, %c0_3] : memref<8x128xf32, #tpu.memory_space<vmem>>, vector<8x128xf32>
    %cst = arith.constant 8.000000e-01 : f32
    %cst_4 = arith.constant 2.000000e-01 : f32
    %c0_i32_5 = arith.constant 0 : i32
    %5 = arith.index_cast %c0_i32_5 : i32 to index
    %c0_6 = arith.constant 0 : index
    %c0_7 = arith.constant 0 : index
    %6 = vector.load %arg2[%5, %c0_6, %c0_7] : memref<8x8x16xbf16, #tpu.memory_space<vmem>>, vector<1x8x16xbf16>
    %7 = vector.shape_cast %6 : vector<1x8x16xbf16> to vector<8x16xbf16>
    %c0_8 = arith.constant 0 : index
    %c0_9 = arith.constant 0 : index
    %8 = vector.load %arg3[%c0_8, %c0_9] : memref<16x128xbf16, #tpu.memory_space<vmem>>, vector<16x128xbf16>
    %cst_10 = arith.constant dense<0.000000e+00> : vector<8x128xf32>
    %9 = tpu.matmul %7, %8, %cst_10 {dimension_numbers = #tpu.dot_dimension_numbers<[1], [0], [0], [1], [0, 0, 1, 1], [], []>} : vector<8x16xbf16>, vector<16x128xbf16>, vector<8x128xf32> -> vector<8x128xf32>
    %10 = vector.broadcast %3 : vector<1x128xf32> to vector<8x128xf32>
    %11 = arith.addf %9, %10 : vector<8x128xf32>
    %12 = arith.index_cast %c0_i32_5 : i32 to index
    %c0_11 = arith.constant 0 : index
    %c0_12 = arith.constant 0 : index
    %13 = vector.load %arg5[%12, %c0_11, %c0_12] : memref<8x8x128xf32, #tpu.memory_space<vmem>>, vector<1x8x128xf32>
    %14 = vector.shape_cast %13 : vector<1x8x128xf32> to vector<8x128xf32>
    %15 = arith.addf %11, %14 : vector<8x128xf32>
    %16 = arith.truncf %4 : vector<8x128xf32> to vector<8x128xbf16>
    %c0_13 = arith.constant 0 : index
    %c0_14 = arith.constant 0 : index
    %17 = vector.load %arg6[%c0_13, %c0_14] : memref<128x128xbf16, #tpu.memory_space<vmem>>, vector<128x128xbf16>
    %cst_15 = arith.constant dense<0.000000e+00> : vector<8x128xf32>
    %18 = tpu.matmul %16, %17, %cst_15 {dimension_numbers = #tpu.dot_dimension_numbers<[1], [0], [0], [1], [0, 0, 1, 1], [], []>} : vector<8x128xbf16>, vector<128x128xbf16>, vector<8x128xf32> -> vector<8x128xf32>
    %19 = arith.addf %15, %18 : vector<8x128xf32>
    %20 = vector.broadcast %cst : f32 to vector<8x128xf32>
    %21 = arith.mulf %20, %4 : vector<8x128xf32>
    %cst_16 = arith.constant 0.000000e+00 : f32
    %22 = vector.broadcast %cst_16 : f32 to vector<8x128xf32>
    %23 = arith.maximumf %19, %22 : vector<8x128xf32>
    %24 = vector.broadcast %cst_4 : f32 to vector<8x128xf32>
    %25 = arith.mulf %24, %23 : vector<8x128xf32>
    %26 = arith.addf %21, %25 : vector<8x128xf32>
    %27 = arith.index_cast %c0_i32_5 : i32 to index
    %c0_17 = arith.constant 0 : index
    %c0_18 = arith.constant 0 : index
    %28 = vector.load %arg7[%27, %c0_17, %c0_18] : memref<8x8x128xf32, #tpu.memory_space<vmem>>, vector<1x8x128xf32>
    %29 = vector.shape_cast %28 : vector<1x8x128xf32> to vector<8x128xf32>
    %30 = vector.shape_cast %26 : vector<8x128xf32> to vector<1x8x128xf32>
    tpu.vector_store %arg7[%27, %c0_17, %c0_18], %30 {strides = array<i32>} : memref<8x8x128xf32, #tpu.memory_space<vmem>>, vector<1x8x128xf32>,
    %c1_i32 = arith.constant 1 : i32
    %31 = arith.index_cast %c1_i32 : i32 to index
    %c0_19 = arith.constant 0 : index
    %c0_20 = arith.constant 0 : index
    %32 = vector.load %arg2[%31, %c0_19, %c0_20] : memref<8x8x16xbf16, #tpu.memory_space<vmem>>, vector<1x8x16xbf16>
    %33 = vector.shape_cast %32 : vector<1x8x16xbf16> to vector<8x16xbf16>
    %c0_21 = arith.constant 0 : index
    %c0_22 = arith.constant 0 : index
    %34 = vector.load %arg3[%c0_21, %c0_22] : memref<16x128xbf16, #tpu.memory_space<vmem>>, vector<16x128xbf16>
    %cst_23 = arith.constant dense<0.000000e+00> : vector<8x128xf32>
    %35 = tpu.matmul %33, %34, %cst_23 {dimension_numbers = #tpu.dot_dimension_numbers<[1], [0], [0], [1], [0, 0, 1, 1], [], []>} : vector<8x16xbf16>, vector<16x128xbf16>, vector<8x128xf32> -> vector<8x128xf32>
    %36 = vector.broadcast %3 : vector<1x128xf32> to vector<8x128xf32>
    %37 = arith.addf %35, %36 : vector<8x128xf32>
    %38 = arith.index_cast %c1_i32 : i32 to index
    %c0_24 = arith.constant 0 : index
    %c0_25 = arith.constant 0 : index
    %39 = vector.load %arg5[%38, %c0_24, %c0_25] : memref<8x8x128xf32, #tpu.memory_space<vmem>>, vector<1x8x128xf32>
    %40 = vector.shape_cast %39 : vector<1x8x128xf32> to vector<8x128xf32>
    %41 = arith.addf %37, %40 : vector<8x128xf32>
    %42 = arith.truncf %26 : vector<8x128xf32> to vector<8x128xbf16>
    %c0_26 = arith.constant 0 : index
    %c0_27 = arith.constant 0 : index
    %43 = vector.load %arg6[%c0_26, %c0_27] : memref<128x128xbf16, #tpu.memory_space<vmem>>, vector<128x128xbf16>
    %cst_28 = arith.constant dense<0.000000e+00> : vector<8x128xf32>
    %44 = tpu.matmul %42, %43, %cst_28 {dimension_numbers = #tpu.dot_dimension_numbers<[1], [0], [0], [1], [0, 0, 1, 1], [], []>} : vector<8x128xbf16>, vector<128x128xbf16>, vector<8x128xf32> -> vector<8x128xf32>
    %45 = arith.addf %41, %44 : vector<8x128xf32>
    %46 = vector.broadcast %cst : f32 to vector<8x128xf32>
    %47 = arith.mulf %46, %26 : vector<8x128xf32>
    %cst_29 = arith.constant 0.000000e+00 : f32
    %48 = vector.broadcast %cst_29 : f32 to vector<8x128xf32>
    %49 = arith.maximumf %45, %48 : vector<8x128xf32>
    %50 = vector.broadcast %cst_4 : f32 to vector<8x128xf32>
    %51 = arith.mulf %50, %49 : vector<8x128xf32>
    %52 = arith.addf %47, %51 : vector<8x128xf32>
    %53 = arith.index_cast %c1_i32 : i32 to index
    %c0_30 = arith.constant 0 : index
    %c0_31 = arith.constant 0 : index
    %54 = vector.load %arg7[%53, %c0_30, %c0_31] : memref<8x8x128xf32, #tpu.memory_space<vmem>>, vector<1x8x128xf32>
    %55 = vector.shape_cast %54 : vector<1x8x128xf32> to vector<8x128xf32>
    %56 = vector.shape_cast %52 : vector<8x128xf32> to vector<1x8x128xf32>
    tpu.vector_store %arg7[%53, %c0_30, %c0_31], %56 {strides = array<i32>} : memref<8x8x128xf32, #tpu.memory_space<vmem>>, vector<1x8x128xf32>,
    %c2_i32 = arith.constant 2 : i32
    %57 = arith.index_cast %c2_i32 : i32 to index
    %c0_32 = arith.constant 0 : index
    %c0_33 = arith.constant 0 : index
    %58 = vector.load %arg2[%57, %c0_32, %c0_33] : memref<8x8x16xbf16, #tpu.memory_space<vmem>>, vector<1x8x16xbf16>
    %59 = vector.shape_cast %58 : vector<1x8x16xbf16> to vector<8x16xbf16>
    %c0_34 = arith.constant 0 : index
    %c0_35 = arith.constant 0 : index
    %60 = vector.load %arg3[%c0_34, %c0_35] : memref<16x128xbf16, #tpu.memory_space<vmem>>, vector<16x128xbf16>
    %cst_36 = arith.constant dense<0.000000e+00> : vector<8x128xf32>
    %61 = tpu.matmul %59, %60, %cst_36 {dimension_numbers = #tpu.dot_dimension_numbers<[1], [0], [0], [1], [0, 0, 1, 1], [], []>} : vector<8x16xbf16>, vector<16x128xbf16>, vector<8x128xf32> -> vector<8x128xf32>
    %62 = vector.broadcast %3 : vector<1x128xf32> to vector<8x128xf32>
    %63 = arith.addf %61, %62 : vector<8x128xf32>
    %64 = arith.index_cast %c2_i32 : i32 to index
    %c0_37 = arith.constant 0 : index
    %c0_38 = arith.constant 0 : index
    %65 = vector.load %arg5[%64, %c0_37, %c0_38] : memref<8x8x128xf32, #tpu.memory_space<vmem>>, vector<1x8x128xf32>
    %66 = vector.shape_cast %65 : vector<1x8x128xf32> to vector<8x128xf32>
    %67 = arith.addf %63, %66 : vector<8x128xf32>
    %68 = arith.truncf %52 : vector<8x128xf32> to vector<8x128xbf16>
    %c0_39 = arith.constant 0 : index
    %c0_40 = arith.constant 0 : index
    %69 = vector.load %arg6[%c0_39, %c0_40] : memref<128x128xbf16, #tpu.memory_space<vmem>>, vector<128x128xbf16>
    %cst_41 = arith.constant dense<0.000000e+00> : vector<8x128xf32>
    %70 = tpu.matmul %68, %69, %cst_41 {dimension_numbers = #tpu.dot_dimension_numbers<[1], [0], [0], [1], [0, 0, 1, 1], [], []>} : vector<8x128xbf16>, vector<128x128xbf16>, vector<8x128xf32> -> vector<8x128xf32>
    %71 = arith.addf %67, %70 : vector<8x128xf32>
    %72 = vector.broadcast %cst : f32 to vector<8x128xf32>
    %73 = arith.mulf %72, %52 : vector<8x128xf32>
    %cst_42 = arith.constant 0.000000e+00 : f32
    %74 = vector.broadcast %cst_42 : f32 to vector<8x128xf32>
    %75 = arith.maximumf %71, %74 : vector<8x128xf32>
    %76 = vector.broadcast %cst_4 : f32 to vector<8x128xf32>
    %77 = arith.mulf %76, %75 : vector<8x128xf32>
    %78 = arith.addf %73, %77 : vector<8x128xf32>
    %79 = arith.index_cast %c2_i32 : i32 to index
    %c0_43 = arith.constant 0 : index
    %c0_44 = arith.constant 0 : index
    %80 = vector.load %arg7[%79, %c0_43, %c0_44] : memref<8x8x128xf32, #tpu.memory_space<vmem>>, vector<1x8x128xf32>
    %81 = vector.shape_cast %80 : vector<1x8x128xf32> to vector<8x128xf32>
    %82 = vector.shape_cast %78 : vector<8x128xf32> to vector<1x8x128xf32>
    tpu.vector_store %arg7[%79, %c0_43, %c0_44], %82 {strides = array<i32>} : memref<8x8x128xf32, #tpu.memory_space<vmem>>, vector<1x8x128xf32>,
    %c3_i32 = arith.constant 3 : i32
    %83 = arith.index_cast %c3_i32 : i32 to index
    %c0_45 = arith.constant 0 : index
    %c0_46 = arith.constant 0 : index
    %84 = vector.load %arg2[%83, %c0_45, %c0_46] : memref<8x8x16xbf16, #tpu.memory_space<vmem>>, vector<1x8x16xbf16>
    %85 = vector.shape_cast %84 : vector<1x8x16xbf16> to vector<8x16xbf16>
    %c0_47 = arith.constant 0 : index
    %c0_48 = arith.constant 0 : index
    %86 = vector.load %arg3[%c0_47, %c0_48] : memref<16x128xbf16, #tpu.memory_space<vmem>>, vector<16x128xbf16>
    %cst_49 = arith.constant dense<0.000000e+00> : vector<8x128xf32>
    %87 = tpu.matmul %85, %86, %cst_49 {dimension_numbers = #tpu.dot_dimension_numbers<[1], [0], [0], [1], [0, 0, 1, 1], [], []>} : vector<8x16xbf16>, vector<16x128xbf16>, vector<8x128xf32> -> vector<8x128xf32>
    %88 = vector.broadcast %3 : vector<1x128xf32> to vector<8x128xf32>
    %89 = arith.addf %87, %88 : vector<8x128xf32>
    %90 = arith.index_cast %c3_i32 : i32 to index
    %c0_50 = arith.constant 0 : index
    %c0_51 = arith.constant 0 : index
    %91 = vector.load %arg5[%90, %c0_50, %c0_51] : memref<8x8x128xf32, #tpu.memory_space<vmem>>, vector<1x8x128xf32>
    %92 = vector.shape_cast %91 : vector<1x8x128xf32> to vector<8x128xf32>
    %93 = arith.addf %89, %92 : vector<8x128xf32>
    %94 = arith.truncf %78 : vector<8x128xf32> to vector<8x128xbf16>
    %c0_52 = arith.constant 0 : index
    %c0_53 = arith.constant 0 : index
    %95 = vector.load %arg6[%c0_52, %c0_53] : memref<128x128xbf16, #tpu.memory_space<vmem>>, vector<128x128xbf16>
    %cst_54 = arith.constant dense<0.000000e+00> : vector<8x128xf32>
    %96 = tpu.matmul %94, %95, %cst_54 {dimension_numbers = #tpu.dot_dimension_numbers<[1], [0], [0], [1], [0, 0, 1, 1], [], []>} : vector<8x128xbf16>, vector<128x128xbf16>, vector<8x128xf32> -> vector<8x128xf32>
    %97 = arith.addf %93, %96 : vector<8x128xf32>
    %98 = vector.broadcast %cst : f32 to vector<8x128xf32>
    %99 = arith.mulf %98, %78 : vector<8x128xf32>
    %cst_55 = arith.constant 0.000000e+00 : f32
    %100 = vector.broadcast %cst_55 : f32 to vector<8x128xf32>
    %101 = arith.maximumf %97, %100 : vector<8x128xf32>
    %102 = vector.broadcast %cst_4 : f32 to vector<8x128xf32>
    %103 = arith.mulf %102, %101 : vector<8x128xf32>
    %104 = arith.addf %99, %103 : vector<8x128xf32>
    %105 = arith.index_cast %c3_i32 : i32 to index
    %c0_56 = arith.constant 0 : index
    %c0_57 = arith.constant 0 : index
    %106 = vector.load %arg7[%105, %c0_56, %c0_57] : memref<8x8x128xf32, #tpu.memory_space<vmem>>, vector<1x8x128xf32>
    %107 = vector.shape_cast %106 : vector<1x8x128xf32> to vector<8x128xf32>
    %108 = vector.shape_cast %104 : vector<8x128xf32> to vector<1x8x128xf32>
    tpu.vector_store %arg7[%105, %c0_56, %c0_57], %108 {strides = array<i32>} : memref<8x8x128xf32, #tpu.memory_space<vmem>>, vector<1x8x128xf32>,
    %c4_i32 = arith.constant 4 : i32
    %109 = arith.index_cast %c4_i32 : i32 to index
    %c0_58 = arith.constant 0 : index
    %c0_59 = arith.constant 0 : index
    %110 = vector.load %arg2[%109, %c0_58, %c0_59] : memref<8x8x16xbf16, #tpu.memory_space<vmem>>, vector<1x8x16xbf16>
    %111 = vector.shape_cast %110 : vector<1x8x16xbf16> to vector<8x16xbf16>
    %c0_60 = arith.constant 0 : index
    %c0_61 = arith.constant 0 : index
    %112 = vector.load %arg3[%c0_60, %c0_61] : memref<16x128xbf16, #tpu.memory_space<vmem>>, vector<16x128xbf16>
    %cst_62 = arith.constant dense<0.000000e+00> : vector<8x128xf32>
    %113 = tpu.matmul %111, %112, %cst_62 {dimension_numbers = #tpu.dot_dimension_numbers<[1], [0], [0], [1], [0, 0, 1, 1], [], []>} : vector<8x16xbf16>, vector<16x128xbf16>, vector<8x128xf32> -> vector<8x128xf32>
    %114 = vector.broadcast %3 : vector<1x128xf32> to vector<8x128xf32>
    %115 = arith.addf %113, %114 : vector<8x128xf32>
    %116 = arith.index_cast %c4_i32 : i32 to index
    %c0_63 = arith.constant 0 : index
    %c0_64 = arith.constant 0 : index
    %117 = vector.load %arg5[%116, %c0_63, %c0_64] : memref<8x8x128xf32, #tpu.memory_space<vmem>>, vector<1x8x128xf32>
    %118 = vector.shape_cast %117 : vector<1x8x128xf32> to vector<8x128xf32>
    %119 = arith.addf %115, %118 : vector<8x128xf32>
    %120 = arith.truncf %104 : vector<8x128xf32> to vector<8x128xbf16>
    %c0_65 = arith.constant 0 : index
    %c0_66 = arith.constant 0 : index
    %121 = vector.load %arg6[%c0_65, %c0_66] : memref<128x128xbf16, #tpu.memory_space<vmem>>, vector<128x128xbf16>
    %cst_67 = arith.constant dense<0.000000e+00> : vector<8x128xf32>
    %122 = tpu.matmul %120, %121, %cst_67 {dimension_numbers = #tpu.dot_dimension_numbers<[1], [0], [0], [1], [0, 0, 1, 1], [], []>} : vector<8x128xbf16>, vector<128x128xbf16>, vector<8x128xf32> -> vector<8x128xf32>
    %123 = arith.addf %119, %122 : vector<8x128xf32>
    %124 = vector.broadcast %cst : f32 to vector<8x128xf32>
    %125 = arith.mulf %124, %104 : vector<8x128xf32>
    %cst_68 = arith.constant 0.000000e+00 : f32
    %126 = vector.broadcast %cst_68 : f32 to vector<8x128xf32>
    %127 = arith.maximumf %123, %126 : vector<8x128xf32>
    %128 = vector.broadcast %cst_4 : f32 to vector<8x128xf32>
    %129 = arith.mulf %128, %127 : vector<8x128xf32>
    %130 = arith.addf %125, %129 : vector<8x128xf32>
    %131 = arith.index_cast %c4_i32 : i32 to index
    %c0_69 = arith.constant 0 : index
    %c0_70 = arith.constant 0 : index
    %132 = vector.load %arg7[%131, %c0_69, %c0_70] : memref<8x8x128xf32, #tpu.memory_space<vmem>>, vector<1x8x128xf32>
    %133 = vector.shape_cast %132 : vector<1x8x128xf32> to vector<8x128xf32>
    %134 = vector.shape_cast %130 : vector<8x128xf32> to vector<1x8x128xf32>
    tpu.vector_store %arg7[%131, %c0_69, %c0_70], %134 {strides = array<i32>} : memref<8x8x128xf32, #tpu.memory_space<vmem>>, vector<1x8x128xf32>,
    %c5_i32 = arith.constant 5 : i32
    %135 = arith.index_cast %c5_i32 : i32 to index
    %c0_71 = arith.constant 0 : index
    %c0_72 = arith.constant 0 : index
    %136 = vector.load %arg2[%135, %c0_71, %c0_72] : memref<8x8x16xbf16, #tpu.memory_space<vmem>>, vector<1x8x16xbf16>
    %137 = vector.shape_cast %136 : vector<1x8x16xbf16> to vector<8x16xbf16>
    %c0_73 = arith.constant 0 : index
    %c0_74 = arith.constant 0 : index
    %138 = vector.load %arg3[%c0_73, %c0_74] : memref<16x128xbf16, #tpu.memory_space<vmem>>, vector<16x128xbf16>
    %cst_75 = arith.constant dense<0.000000e+00> : vector<8x128xf32>
    %139 = tpu.matmul %137, %138, %cst_75 {dimension_numbers = #tpu.dot_dimension_numbers<[1], [0], [0], [1], [0, 0, 1, 1], [], []>} : vector<8x16xbf16>, vector<16x128xbf16>, vector<8x128xf32> -> vector<8x128xf32>
    %140 = vector.broadcast %3 : vector<1x128xf32> to vector<8x128xf32>
    %141 = arith.addf %139, %140 : vector<8x128xf32>
    %142 = arith.index_cast %c5_i32 : i32 to index
    %c0_76 = arith.constant 0 : index
    %c0_77 = arith.constant 0 : index
    %143 = vector.load %arg5[%142, %c0_76, %c0_77] : memref<8x8x128xf32, #tpu.memory_space<vmem>>, vector<1x8x128xf32>
    %144 = vector.shape_cast %143 : vector<1x8x128xf32> to vector<8x128xf32>
    %145 = arith.addf %141, %144 : vector<8x128xf32>
    %146 = arith.truncf %130 : vector<8x128xf32> to vector<8x128xbf16>
    %c0_78 = arith.constant 0 : index
    %c0_79 = arith.constant 0 : index
    %147 = vector.load %arg6[%c0_78, %c0_79] : memref<128x128xbf16, #tpu.memory_space<vmem>>, vector<128x128xbf16>
    %cst_80 = arith.constant dense<0.000000e+00> : vector<8x128xf32>
    %148 = tpu.matmul %146, %147, %cst_80 {dimension_numbers = #tpu.dot_dimension_numbers<[1], [0], [0], [1], [0, 0, 1, 1], [], []>} : vector<8x128xbf16>, vector<128x128xbf16>, vector<8x128xf32> -> vector<8x128xf32>
    %149 = arith.addf %145, %148 : vector<8x128xf32>
    %150 = vector.broadcast %cst : f32 to vector<8x128xf32>
    %151 = arith.mulf %150, %130 : vector<8x128xf32>
    %cst_81 = arith.constant 0.000000e+00 : f32
    %152 = vector.broadcast %cst_81 : f32 to vector<8x128xf32>
    %153 = arith.maximumf %149, %152 : vector<8x128xf32>
    %154 = vector.broadcast %cst_4 : f32 to vector<8x128xf32>
    %155 = arith.mulf %154, %153 : vector<8x128xf32>
    %156 = arith.addf %151, %155 : vector<8x128xf32>
    %157 = arith.index_cast %c5_i32 : i32 to index
    %c0_82 = arith.constant 0 : index
    %c0_83 = arith.constant 0 : index
    %158 = vector.load %arg7[%157, %c0_82, %c0_83] : memref<8x8x128xf32, #tpu.memory_space<vmem>>, vector<1x8x128xf32>
    %159 = vector.shape_cast %158 : vector<1x8x128xf32> to vector<8x128xf32>
    %160 = vector.shape_cast %156 : vector<8x128xf32> to vector<1x8x128xf32>
    tpu.vector_store %arg7[%157, %c0_82, %c0_83], %160 {strides = array<i32>} : memref<8x8x128xf32, #tpu.memory_space<vmem>>, vector<1x8x128xf32>,
    %c6_i32 = arith.constant 6 : i32
    %161 = arith.index_cast %c6_i32 : i32 to index
    %c0_84 = arith.constant 0 : index
    %c0_85 = arith.constant 0 : index
    %162 = vector.load %arg2[%161, %c0_84, %c0_85] : memref<8x8x16xbf16, #tpu.memory_space<vmem>>, vector<1x8x16xbf16>
    %163 = vector.shape_cast %162 : vector<1x8x16xbf16> to vector<8x16xbf16>
    %c0_86 = arith.constant 0 : index
    %c0_87 = arith.constant 0 : index
    %164 = vector.load %arg3[%c0_86, %c0_87] : memref<16x128xbf16, #tpu.memory_space<vmem>>, vector<16x128xbf16>
    %cst_88 = arith.constant dense<0.000000e+00> : vector<8x128xf32>
    %165 = tpu.matmul %163, %164, %cst_88 {dimension_numbers = #tpu.dot_dimension_numbers<[1], [0], [0], [1], [0, 0, 1, 1], [], []>} : vector<8x16xbf16>, vector<16x128xbf16>, vector<8x128xf32> -> vector<8x128xf32>
    %166 = vector.broadcast %3 : vector<1x128xf32> to vector<8x128xf32>
    %167 = arith.addf %165, %166 : vector<8x128xf32>
    %168 = arith.index_cast %c6_i32 : i32 to index
    %c0_89 = arith.constant 0 : index
    %c0_90 = arith.constant 0 : index
    %169 = vector.load %arg5[%168, %c0_89, %c0_90] : memref<8x8x128xf32, #tpu.memory_space<vmem>>, vector<1x8x128xf32>
    %170 = vector.shape_cast %169 : vector<1x8x128xf32> to vector<8x128xf32>
    %171 = arith.addf %167, %170 : vector<8x128xf32>
    %172 = arith.truncf %156 : vector<8x128xf32> to vector<8x128xbf16>
    %c0_91 = arith.constant 0 : index
    %c0_92 = arith.constant 0 : index
    %173 = vector.load %arg6[%c0_91, %c0_92] : memref<128x128xbf16, #tpu.memory_space<vmem>>, vector<128x128xbf16>
    %cst_93 = arith.constant dense<0.000000e+00> : vector<8x128xf32>
    %174 = tpu.matmul %172, %173, %cst_93 {dimension_numbers = #tpu.dot_dimension_numbers<[1], [0], [0], [1], [0, 0, 1, 1], [], []>} : vector<8x128xbf16>, vector<128x128xbf16>, vector<8x128xf32> -> vector<8x128xf32>
    %175 = arith.addf %171, %174 : vector<8x128xf32>
    %176 = vector.broadcast %cst : f32 to vector<8x128xf32>
    %177 = arith.mulf %176, %156 : vector<8x128xf32>
    %cst_94 = arith.constant 0.000000e+00 : f32
    %178 = vector.broadcast %cst_94 : f32 to vector<8x128xf32>
    %179 = arith.maximumf %175, %178 : vector<8x128xf32>
    %180 = vector.broadcast %cst_4 : f32 to vector<8x128xf32>
    %181 = arith.mulf %180, %179 : vector<8x128xf32>
    %182 = arith.addf %177, %181 : vector<8x128xf32>
    %183 = arith.index_cast %c6_i32 : i32 to index
    %c0_95 = arith.constant 0 : index
    %c0_96 = arith.constant 0 : index
    %184 = vector.load %arg7[%183, %c0_95, %c0_96] : memref<8x8x128xf32, #tpu.memory_space<vmem>>, vector<1x8x128xf32>
    %185 = vector.shape_cast %184 : vector<1x8x128xf32> to vector<8x128xf32>
    %186 = vector.shape_cast %182 : vector<8x128xf32> to vector<1x8x128xf32>
    tpu.vector_store %arg7[%183, %c0_95, %c0_96], %186 {strides = array<i32>} : memref<8x8x128xf32, #tpu.memory_space<vmem>>, vector<1x8x128xf32>,
    %c7_i32 = arith.constant 7 : i32
    %187 = arith.index_cast %c7_i32 : i32 to index
    %c0_97 = arith.constant 0 : index
    %c0_98 = arith.constant 0 : index
    %188 = vector.load %arg2[%187, %c0_97, %c0_98] : memref<8x8x16xbf16, #tpu.memory_space<vmem>>, vector<1x8x16xbf16>
    %189 = vector.shape_cast %188 : vector<1x8x16xbf16> to vector<8x16xbf16>
    %c0_99 = arith.constant 0 : index
    %c0_100 = arith.constant 0 : index
    %190 = vector.load %arg3[%c0_99, %c0_100] : memref<16x128xbf16, #tpu.memory_space<vmem>>, vector<16x128xbf16>
    %cst_101 = arith.constant dense<0.000000e+00> : vector<8x128xf32>
    %191 = tpu.matmul %189, %190, %cst_101 {dimension_numbers = #tpu.dot_dimension_numbers<[1], [0], [0], [1], [0, 0, 1, 1], [], []>} : vector<8x16xbf16>, vector<16x128xbf16>, vector<8x128xf32> -> vector<8x128xf32>
    %192 = vector.broadcast %3 : vector<1x128xf32> to vector<8x128xf32>
    %193 = arith.addf %191, %192 : vector<8x128xf32>
    %194 = arith.index_cast %c7_i32 : i32 to index
    %c0_102 = arith.constant 0 : index
    %c0_103 = arith.constant 0 : index
    %195 = vector.load %arg5[%194, %c0_102, %c0_103] : memref<8x8x128xf32, #tpu.memory_space<vmem>>, vector<1x8x128xf32>
    %196 = vector.shape_cast %195 : vector<1x8x128xf32> to vector<8x128xf32>
    %197 = arith.addf %193, %196 : vector<8x128xf32>
    %198 = arith.truncf %182 : vector<8x128xf32> to vector<8x128xbf16>
    %c0_104 = arith.constant 0 : index
    %c0_105 = arith.constant 0 : index
    %199 = vector.load %arg6[%c0_104, %c0_105] : memref<128x128xbf16, #tpu.memory_space<vmem>>, vector<128x128xbf16>
    %cst_106 = arith.constant dense<0.000000e+00> : vector<8x128xf32>
    %200 = tpu.matmul %198, %199, %cst_106 {dimension_numbers = #tpu.dot_dimension_numbers<[1], [0], [0], [1], [0, 0, 1, 1], [], []>} : vector<8x128xbf16>, vector<128x128xbf16>, vector<8x128xf32> -> vector<8x128xf32>
    %201 = arith.addf %197, %200 : vector<8x128xf32>
    %202 = vector.broadcast %cst : f32 to vector<8x128xf32>
    %203 = arith.mulf %202, %182 : vector<8x128xf32>
    %cst_107 = arith.constant 0.000000e+00 : f32
    %204 = vector.broadcast %cst_107 : f32 to vector<8x128xf32>
    %205 = arith.maximumf %201, %204 : vector<8x128xf32>
    %206 = vector.broadcast %cst_4 : f32 to vector<8x128xf32>
    %207 = arith.mulf %206, %205 : vector<8x128xf32>
    %208 = arith.addf %203, %207 : vector<8x128xf32>
    %209 = arith.index_cast %c7_i32 : i32 to index
    %c0_108 = arith.constant 0 : index
    %c0_109 = arith.constant 0 : index
    %210 = vector.load %arg7[%209, %c0_108, %c0_109] : memref<8x8x128xf32, #tpu.memory_space<vmem>>, vector<1x8x128xf32>
    %211 = vector.shape_cast %210 : vector<1x8x128xf32> to vector<8x128xf32>
    %212 = vector.shape_cast %208 : vector<8x128xf32> to vector<1x8x128xf32>
    tpu.vector_store %arg7[%209, %c0_108, %c0_109], %212 {strides = array<i32>} : memref<8x8x128xf32, #tpu.memory_space<vmem>>, vector<1x8x128xf32>,
    %c8_i32 = arith.constant 8 : i32
    %c0_110 = arith.constant 0 : index
    %c0_111 = arith.constant 0 : index
    %213 = vector.load %arg8[%c0_110, %c0_111] : memref<8x128xf32, #tpu.memory_space<vmem>>, vector<8x128xf32>
    tpu.vector_store %arg8[%c0_110, %c0_111], %208 {strides = array<i32>} : memref<8x128xf32, #tpu.memory_space<vmem>>, vector<8x128xf32>,
    return
  }
  func.func @transform_0(%arg0: i32, %arg1: i32) -> (i32, i32, i32) {
    %c0_i32 = arith.constant 0 : i32
    %c0_i32_0 = arith.constant 0 : i32
    return %arg1, %arg0, %c0_i32 : i32, i32, i32
  }
  func.func @transform_1(%arg0: i32, %arg1: i32) -> (i32, i32) {
    %c0_i32 = arith.constant 0 : i32
    %c0_i32_0 = arith.constant 0 : i32
    %c0_i32_1 = arith.constant 0 : i32
    return %c0_i32, %c0_i32_0 : i32, i32
  }
  func.func @transform_2(%arg0: i32, %arg1: i32) -> (i32, i32) {
    %c0_i32 = arith.constant 0 : i32
    %c0_i32_0 = arith.constant 0 : i32
    %c0_i32_1 = arith.constant 0 : i32
    return %c0_i32, %c0_i32_0 : i32, i32
  }
  func.func @transform_3(%arg0: i32, %arg1: i32) -> (i32, i32, i32) {
    %c0_i32 = arith.constant 0 : i32
    %c0_i32_0 = arith.constant 0 : i32
    return %arg1, %arg0, %c0_i32 : i32, i32, i32
  }
  func.func @transform_4(%arg0: i32, %arg1: i32) -> (i32, i32) {
    %c0_i32 = arith.constant 0 : i32
    %c0_i32_0 = arith.constant 0 : i32
    %c0_i32_1 = arith.constant 0 : i32
    return %c0_i32, %c0_i32_0 : i32, i32
  }
  func.func @transform_5(%arg0: i32, %arg1: i32) -> (i32, i32, i32) {
    %c0_i32 = arith.constant 0 : i32
    %c0_i32_0 = arith.constant 0 : i32
    return %arg1, %arg0, %c0_i32 : i32, i32, i32
  }
}

</mosaic_0001>

<llo_original>
// kernel: tpu_custom_call.1
$region0: #{tpu_custom_call.1}
  #allocation0 [shape = 'u32[]', space=smem, size = 0x4, offset = 0x4, fixed_abs, tag = 'smem constant byte address 0x4 - core index']
  #allocation1 [shape = 'u32[72,128]{1,0:T(1,128)}', space=vmem, size = 0x9000, scoped, tag = 'internal scratch']
  #allocation2 [shape = 'f32[8,128]{1,0:T(8,128)}', space=vmem, size = 0x1000, scoped, tag = 'scratch operand']
  %s0 = inlined_call_operand.hbm [shape: bf16[8,8,16], index: 0, kind: input, shape index: {}]
  %s1 = inlined_call_operand.hbm [shape: bf16[16,128], index: 1, kind: input, shape index: {}]
  %s2 = inlined_call_operand.vmem [shape: f32[1,128], index: 2, kind: input, shape index: {}]
  %s3 = inlined_call_operand.hbm [shape: f32[8,8,128], index: 3, kind: input, shape index: {}]
  %s4 = inlined_call_operand.hbm [shape: bf16[128,128], index: 4, kind: input, shape index: {}]
  %s5 = inlined_call_operand.hbm [shape: f32[8,8,128], index: 5, kind: output, shape index: {}]
  %s6 = sld [smem:[#allocation0]]
  $region50: #{tpu_custom_call.1} parent=0
    _
  %s8 = ssub.s32 1, %s6
  %s9 = scalar_select 0, %s8, %s6
  $region1: #{tpu_custom_call.1} parent=0
    #allocation3 [shape = 'u8[16384]{0}', space=vmem, size = 0x4000, scoped, tag = 'input window, operand 0, single buffered']
    #allocation4 [shape = 's32[1]{0}', space=sflag, size = 0x4, scoped, tag = 'scoped memory for tpu_custom_call.1']
    #allocation5 [shape = 's32[1]{0}', space=sflag, size = 0x4, scoped, tag = 'scoped memory for tpu_custom_call.1']
    #allocation6 [shape = 'u8[4096]{0}', space=vmem, size = 0x1000, scoped, tag = 'input window, operand 1, single buffered']
    #allocation7 [shape = 's32[1]{0}', space=sflag, size = 0x4, scoped, tag = 'scoped memory for tpu_custom_call.1']
    #allocation8 [shape = 'u8[32768]{0}', space=vmem, size = 0x8000, scoped, tag = 'input window, operand 3, single buffered']
    #allocation9 [shape = 'u8[32768]{0}', space=vmem, size = 0x8000, scoped, tag = 'input window, operand 4, single buffered']
    #allocation10 [shape = 's32[1]{0}', space=sflag, size = 0x4, scoped, tag = 'scoped memory for tpu_custom_call.1']
    #allocation11 [shape = 'u8[32768]{0}', space=vmem, size = 0x8000, scoped, tag = 'output window, operand 0, single buffered']
    %10 = vsyncpa [#allocation4], 0
    %11 = vsyncpa [#allocation7], 0
    %12 = vsyncpa [#allocation10], 0
    %13 = vsyncpa [#allocation5], 0
    // Predicated region
    $region2: #{tpu_custom_call.1} parent=1 // pred_check
      _
    $region3: #{tpu_custom_call.1} parent=1 // pred_check_branch
      %15 = sbr.rel (0) target = $region5
    $region4: #{tpu_custom_call.1} parent=1 // pred_region
      %17 = vsyncadd [#allocation4], 0
      %s18 = sshll.u32 %s0, 4
      %s19 = int_to_ptr.hbm [resolvable:$true] %s18
      %s20 = sshll.u32 [#allocation3], 4
      %s21 = int_to_ptr.vmem [resolvable:$true] %s20
      %26 = dma.hbm_to_vmem [thread:$0]  %s19, 512, %s21, [#allocation4], 64, 64, 4
    $region5: #{tpu_custom_call.1} parent=1 // pred_fallthru
      _
    // Predicated region
    $region6: #{tpu_custom_call.1} parent=1 // pred_check
      _
    $region7: #{tpu_custom_call.1} parent=1 // pred_check_branch
      %28 = sbr.rel (0) target = $region9
    $region8: #{tpu_custom_call.1} parent=1 // pred_region
      %30 = vsyncadd [#allocation7], 0
      %s31 = sshll.u32 %s1, 4
      %s32 = int_to_ptr.hbm [resolvable:$true] %s31
      %s33 = sshll.u32 [#allocation6], 4
      %s34 = int_to_ptr.vmem [resolvable:$true] %s33
      %39 = dma.hbm_to_vmem [thread:$0]  %s32, 128, %s34, [#allocation7], 64, 64, 4
    $region9: #{tpu_custom_call.1} parent=1 // pred_fallthru
      _
    // Predicated region
    $region10: #{tpu_custom_call.1} parent=1 // pred_check
      _
    $region11: #{tpu_custom_call.1} parent=1 // pred_check_branch
      %41 = sbr.rel (0) target = $region13
    $region12: #{tpu_custom_call.1} parent=1 // pred_region
      _
    $region13: #{tpu_custom_call.1} parent=1 // pred_fallthru
      _
    // Predicated region
    $region14: #{tpu_custom_call.1} parent=1 // pred_check
      _
    $region15: #{tpu_custom_call.1} parent=1 // pred_check_branch
      %43 = sbr.rel (0) target = $region17
    $region16: #{tpu_custom_call.1} parent=1 // pred_region
      %45 = vsyncadd [#allocation7], 0
      %s46 = sshll.u32 %s3, 4
      %s47 = int_to_ptr.hbm [resolvable:$true] %s46
      %s48 = sshll.u32 [#allocation8], 4
      %s49 = int_to_ptr.vmem [resolvable:$true] %s48
      %54 = dma.hbm_to_vmem [thread:$0]  %s47, 1024, %s49, [#allocation7], 128, 128, 8
    $region17: #{tpu_custom_call.1} parent=1 // pred_fallthru
      _
    // Predicated region
    $region18: #{tpu_custom_call.1} parent=1 // pred_check
      _
    $region19: #{tpu_custom_call.1} parent=1 // pred_check_branch
      %56 = sbr.rel (0) target = $region21
    $region20: #{tpu_custom_call.1} parent=1 // pred_region
      %58 = vsyncadd [#allocation10], 0
      %s59 = sshll.u32 %s4, 4
      %s60 = int_to_ptr.hbm [resolvable:$true] %s59
      %s61 = sshll.u32 [#allocation9], 4
      %s62 = int_to_ptr.vmem [resolvable:$true] %s61
      %67 = dma.hbm_to_vmem [thread:$0]  %s60, 1024, %s62, [#allocation10], 64, 64, 4
    $region21: #{tpu_custom_call.1} parent=1 // pred_fallthru
      _
    // Predicated region
    $region22: #{tpu_custom_call.1} parent=1 // pred_check
      _
    $region23: #{tpu_custom_call.1} parent=1 // pred_check_branch
      %69 = sbr.rel (0) target = $region25
    $region24: #{tpu_custom_call.1} parent=1 // pred_region
      %71 = dma.done [#allocation4], 512
    $region25: #{tpu_custom_call.1} parent=1 // pred_fallthru
      _
    // Predicated region
    $region26: #{tpu_custom_call.1} parent=1 // pred_check
      _
    $region27: #{tpu_custom_call.1} parent=1 // pred_check_branch
      %73 = sbr.rel (0) target = $region29
    $region28: #{tpu_custom_call.1} parent=1 // pred_region
      %75 = dma.done [#allocation7], 128
    $region29: #{tpu_custom_call.1} parent=1 // pred_fallthru
      _
    // Predicated region
    $region30: #{tpu_custom_call.1} parent=1 // pred_check
      _
    $region31: #{tpu_custom_call.1} parent=1 // pred_check_branch
      %77 = sbr.rel (0) target = $region33
    $region32: #{tpu_custom_call.1} parent=1 // pred_region
      %79 = dma.done [#allocation7], 1024
    $region33: #{tpu_custom_call.1} parent=1 // pred_fallthru
      _
    // Predicated region
    $region34: #{tpu_custom_call.1} parent=1 // pred_check
      _
    $region35: #{tpu_custom_call.1} parent=1 // pred_check_branch
      %81 = sbr.rel (0) target = $region37
    $region36: #{tpu_custom_call.1} parent=1 // pred_region
      %83 = dma.done [#allocation10], 1024
    $region37: #{tpu_custom_call.1} parent=1 // pred_fallthru
      _
    %p85 = scmp.eq.s32.totalorder 0, 0
    // Predicated region
    $region38: #{tpu_custom_call.1} parent=1 // pred_check
      %p86 = pneg %p85
    $region39: #{tpu_custom_call.1} parent=1 // pred_check_branch
      %88 = sbr.rel (%p86) target = $region41
    $region40: #{tpu_custom_call.1} parent=1 // pred_region
      %89 = vst [vmem:[#allocation2] sm:$0xff] 0.0
    $region41: #{tpu_custom_call.1} parent=1 // pred_fallthru
      _
    %v90 = vld [vmem:[%s2] sm:$0x1]
    %v91 = vld [vmem:[#allocation2] sm:$0xff]
    %v92 = vld [vmem:[#allocation3] sm:$0xf]
    %v93 = vld [vmem:[#allocation6] sm:$0xf]
    %v94 = vld [vmem:[#allocation6 + $0x4] sm:$0xf]
    %v96 = vperm.slane %v90, 0
    %v100 = vunpack.c.l.b16 %v93
    %v101 = vunpack.c.l.b16 %v94
    %v102 = vpack.c.b16 %v101, %v100
    %vm104 = vcmask 130048
    %v106 = vsel %vm104, %v92, 0
    %108 = vmatpush.bf16.msra.mxu0 0
    %109 = vmatpush.bf16.msra.mxu0 0
    %110 = vmatpush.bf16.msra.mxu0 0
    %111 = vmatpush.bf16.msra.mxu0 0
    %112 = vmatpush.bf16.msra.mxu0 0
    %113 = vmatpush.bf16.msra.mxu0 0
    %114 = vmatpush.bf16.msra.mxu0 0
    %115 = vmatpush.bf16.msra.mxu0 %v102
    %116 = vmatmul.bf16.gmra.mxu0 %v106
    %v117 = vpop.f32.mrf.mxu0
    %v118 = vadd.f32 %v96, %v117
    %v119 = vpop.f32.mrf.mxu0
    %120 = vdwg.mxu0
    %v121 = vld [vmem:[#allocation8] sm:$0xff]
    %v122 = vadd.f32 %v118, %v121
    %v123 = vpack.c.bf16 %v91, %v91
    %v124 = vld [vmem:[#allocation9] sm:$0xf]
    %v125 = vld [vmem:[#allocation9 + $0x4] sm:$0xf]
    %v126 = vld [vmem:[#allocation9 + $0x8] sm:$0xf]
    %v127 = vld [vmem:[#allocation9 + $0xc] sm:$0xf]
    %v128 = vld [vmem:[#allocation9 + $0x10] sm:$0xf]
    %v129 = vld [vmem:[#allocation9 + $0x14] sm:$0xf]
    %v130 = vld [vmem:[#allocation9 + $0x18] sm:$0xf]
    %v131 = vld [vmem:[#allocation9 + $0x1c] sm:$0xf]
    %v132 = vld [vmem:[#allocation9 + $0x20] sm:$0xf]
    %v133 = vld [vmem:[#allocation9 + $0x24] sm:$0xf]
    %v134 = vld [vmem:[#allocation9 + $0x28] sm:$0xf]
    %v135 = vld [vmem:[#allocation9 + $0x2c] sm:$0xf]
    %v136 = vld [vmem:[#allocation9 + $0x30] sm:$0xf]
    %v137 = vld [vmem:[#allocation9 + $0x34] sm:$0xf]
    %v138 = vld [vmem:[#allocation9 + $0x38] sm:$0xf]
    %v139 = vld [vmem:[#allocation9 + $0x3c] sm:$0xf]
    %v156 = vunpack.c.l.b16 %v124
    %v157 = vunpack.c.l.b16 %v125
    %v158 = vunpack.c.l.b16 %v126
    %v159 = vunpack.c.l.b16 %v127
    %v160 = vunpack.c.l.b16 %v128
    %v161 = vunpack.c.l.b16 %v129
    %v162 = vunpack.c.l.b16 %v130
    %v163 = vunpack.c.l.b16 %v131
    %v164 = vunpack.c.l.b16 %v132
    %v165 = vunpack.c.l.b16 %v133
    %v166 = vunpack.c.l.b16 %v134
    %v167 = vunpack.c.l.b16 %v135
    %v168 = vunpack.c.l.b16 %v136
    %v169 = vunpack.c.l.b16 %v137
    %v170 = vunpack.c.l.b16 %v138
    %v171 = vunpack.c.l.b16 %v139
    %v172 = vpack.c.b16 %v157, %v156
    %v173 = vpack.c.b16 %v159, %v158
    %v174 = vpack.c.b16 %v161, %v160
    %v175 = vpack.c.b16 %v163, %v162
    %v176 = vpack.c.b16 %v165, %v164
    %v177 = vpack.c.b16 %v167, %v166
    %v178 = vpack.c.b16 %v169, %v168
    %v179 = vpack.c.b16 %v171, %v170
    %188 = vmatpush.bf16.msra.mxu0 %v179
    %189 = vmatpush.bf16.msra.mxu0 %v178
    %190 = vmatpush.bf16.msra.mxu0 %v177
    %191 = vmatpush.bf16.msra.mxu0 %v176
    %192 = vmatpush.bf16.msra.mxu0 %v175
    %193 = vmatpush.bf16.msra.mxu0 %v174
    %194 = vmatpush.bf16.msra.mxu0 %v173
    %195 = vmatpush.bf16.msra.mxu0 %v172
    %196 = vmatmul.bf16.gmra.mxu0 %v123
    %v197 = vpop.f32.mrf.mxu0
    %v198 = vadd.f32 0.0, %v197
    %v199 = vpop.f32.mrf.mxu0
    %200 = vdwg.mxu0
    %v201 = vadd.f32 %v122, %v198
    %v202 = vmul.f32 %v91, 0.8
    %v203 = vmax.f32 %v201, 0.0
    %v204 = vmul.f32 %v203, 0.2
    %v205 = vadd.f32 %v202, %v204
    %206 = vst [vmem:[#allocation11] sm:$0xff] %v205
    %s207 = scalar_lea.vmem [#allocation3], 4
    %v208 = vld [vmem:[%s207] sm:$0xf]
    %v209 = vld [vmem:[#allocation6] sm:$0xf]
    %v210 = vld [vmem:[#allocation6 + $0x4] sm:$0xf]
    %v213 = vunpack.c.l.b16 %v209
    %v214 = vunpack.c.l.b16 %v210
    %v215 = vpack.c.b16 %v214, %v213
    %v218 = vsel %vm104, %v208, 0
    %220 = vmatpush.bf16.msra.mxu0 0
    %221 = vmatpush.bf16.msra.mxu0 0
    %222 = vmatpush.bf16.msra.mxu0 0
    %223 = vmatpush.bf16.msra.mxu0 0
    %224 = vmatpush.bf16.msra.mxu0 0
    %225 = vmatpush.bf16.msra.mxu0 0
    %226 = vmatpush.bf16.msra.mxu0 0
    %227 = vmatpush.bf16.msra.mxu0 %v215
    %228 = vmatmul.bf16.gmra.mxu0 %v218
    %v229 = vpop.f32.mrf.mxu0
    %v230 = vadd.f32 %v96, %v229
    %v231 = vpop.f32.mrf.mxu0
    %232 = vdwg.mxu0
    %s233 = scalar_lea.vmem [#allocation8], 8
    %v234 = vld [vmem:[%s233] sm:$0xff]
    %v235 = vadd.f32 %v230, %v234
    %v236 = vpack.c.bf16 %v205, %v205
    %v237 = vld [vmem:[#allocation9] sm:$0xf]
    %v238 = vld [vmem:[#allocation9 + $0x4] sm:$0xf]
    %v239 = vld [vmem:[#allocation9 + $0x8] sm:$0xf]
    %v240 = vld [vmem:[#allocation9 + $0xc] sm:$0xf]
    %v241 = vld [vmem:[#allocation9 + $0x10] sm:$0xf]
    %v242 = vld [vmem:[#allocation9 + $0x14] sm:$0xf]
    %v243 = vld [vmem:[#allocation9 + $0x18] sm:$0xf]
    %v244 = vld [vmem:[#allocation9 + $0x1c] sm:$0xf]
    %v245 = vld [vmem:[#allocation9 + $0x20] sm:$0xf]
    %v246 = vld [vmem:[#allocation9 + $0x24] sm:$0xf]
    %v247 = vld [vmem:[#allocation9 + $0x28] sm:$0xf]
    %v248 = vld [vmem:[#allocation9 + $0x2c] sm:$0xf]
    %v249 = vld [vmem:[#allocation9 + $0x30] sm:$0xf]
    %v250 = vld [vmem:[#allocation9 + $0x34] sm:$0xf]
    %v251 = vld [vmem:[#allocation9 + $0x38] sm:$0xf]
    %v252 = vld [vmem:[#allocation9 + $0x3c] sm:$0xf]
    %v269 = vunpack.c.l.b16 %v237
    %v270 = vunpack.c.l.b16 %v238
    %v271 = vunpack.c.l.b16 %v239
    %v272 = vunpack.c.l.b16 %v240
    %v273 = vunpack.c.l.b16 %v241
    %v274 = vunpack.c.l.b16 %v242
    %v275 = vunpack.c.l.b16 %v243
    %v276 = vunpack.c.l.b16 %v244
    %v277 = vunpack.c.l.b16 %v245
    %v278 = vunpack.c.l.b16 %v246
    %v279 = vunpack.c.l.b16 %v247
    %v280 = vunpack.c.l.b16 %v248
    %v281 = vunpack.c.l.b16 %v249
    %v282 = vunpack.c.l.b16 %v250
    %v283 = vunpack.c.l.b16 %v251
    %v284 = vunpack.c.l.b16 %v252
    %v285 = vpack.c.b16 %v270, %v269
    %v286 = vpack.c.b16 %v272, %v271
    %v287 = vpack.c.b16 %v274, %v273
    %v288 = vpack.c.b16 %v276, %v275
    %v289 = vpack.c.b16 %v278, %v277
    %v290 = vpack.c.b16 %v280, %v279
    %v291 = vpack.c.b16 %v282, %v281
    %v292 = vpack.c.b16 %v284, %v283
    %301 = vmatpush.bf16.msra.mxu0 %v292
    %302 = vmatpush.bf16.msra.mxu0 %v291
    %303 = vmatpush.bf16.msra.mxu0 %v290
    %304 = vmatpush.bf16.msra.mxu0 %v289
    %305 = vmatpush.bf16.msra.mxu0 %v288
    %306 = vmatpush.bf16.msra.mxu0 %v287
    %307 = vmatpush.bf16.msra.mxu0 %v286
    %308 = vmatpush.bf16.msra.mxu0 %v285
    %309 = vmatmul.bf16.gmra.mxu0 %v236
    %v310 = vpop.f32.mrf.mxu0
    %v311 = vadd.f32 0.0, %v310
    %v312 = vpop.f32.mrf.mxu0
    %313 = vdwg.mxu0
    %v314 = vadd.f32 %v235, %v311
    %v315 = vmul.f32 %v205, 0.8
    %v316 = vmax.f32 %v314, 0.0
    %v317 = vmul.f32 %v316, 0.2
    %v318 = vadd.f32 %v315, %v317
    %s319 = scalar_lea.vmem [#allocation11], 8
    %320 = vst [vmem:[%s319] sm:$0xff] %v318
    %s321 = scalar_lea.vmem [#allocation3], 8
    %v322 = vld [vmem:[%s321] sm:$0xf]
    %v323 = vld [vmem:[#allocation6] sm:$0xf]
    %v324 = vld [vmem:[#allocation6 + $0x4] sm:$0xf]
    %v327 = vunpack.c.l.b16 %v323
    %v328 = vunpack.c.l.b16 %v324
    %v329 = vpack.c.b16 %v328, %v327
    %v332 = vsel %vm104, %v322, 0
    %334 = vmatpush.bf16.msra.mxu0 0
    %335 = vmatpush.bf16.msra.mxu0 0
    %336 = vmatpush.bf16.msra.mxu0 0
    %337 = vmatpush.bf16.msra.mxu0 0
    %338 = vmatpush.bf16.msra.mxu0 0
    %339 = vmatpush.bf16.msra.mxu0 0
    %340 = vmatpush.bf16.msra.mxu0 0
    %341 = vmatpush.bf16.msra.mxu0 %v329
    %342 = vmatmul.bf16.gmra.mxu0 %v332
    %v343 = vpop.f32.mrf.mxu0
    %v344 = vadd.f32 %v96, %v343
    %v345 = vpop.f32.mrf.mxu0
    %346 = vdwg.mxu0
    %s347 = scalar_lea.vmem [#allocation8], 16
    %v348 = vld [vmem:[%s347] sm:$0xff]
    %v349 = vadd.f32 %v344, %v348
    %v350 = vpack.c.bf16 %v318, %v318
    %v351 = vld [vmem:[#allocation9] sm:$0xf]
    %v352 = vld [vmem:[#allocation9 + $0x4] sm:$0xf]
    %v353 = vld [vmem:[#allocation9 + $0x8] sm:$0xf]
    %v354 = vld [vmem:[#allocation9 + $0xc] sm:$0xf]
    %v355 = vld [vmem:[#allocation9 + $0x10] sm:$0xf]
    %v356 = vld [vmem:[#allocation9 + $0x14] sm:$0xf]
    %v357 = vld [vmem:[#allocation9 + $0x18] sm:$0xf]
    %v358 = vld [vmem:[#allocation9 + $0x1c] sm:$0xf]
    %v359 = vld [vmem:[#allocation9 + $0x20] sm:$0xf]
    %v360 = vld [vmem:[#allocation9 + $0x24] sm:$0xf]
    %v361 = vld [vmem:[#allocation9 + $0x28] sm:$0xf]
    %v362 = vld [vmem:[#allocation9 + $0x2c] sm:$0xf]
    %v363 = vld [vmem:[#allocation9 + $0x30] sm:$0xf]
    %v364 = vld [vmem:[#allocation9 + $0x34] sm:$0xf]
    %v365 = vld [vmem:[#allocation9 + $0x38] sm:$0xf]
    %v366 = vld [vmem:[#allocation9 + $0x3c] sm:$0xf]
    %v383 = vunpack.c.l.b16 %v351
    %v384 = vunpack.c.l.b16 %v352
    %v385 = vunpack.c.l.b16 %v353
    %v386 = vunpack.c.l.b16 %v354
    %v387 = vunpack.c.l.b16 %v355
    %v388 = vunpack.c.l.b16 %v356
    %v389 = vunpack.c.l.b16 %v357
    %v390 = vunpack.c.l.b16 %v358
    %v391 = vunpack.c.l.b16 %v359
    %v392 = vunpack.c.l.b16 %v360
    %v393 = vunpack.c.l.b16 %v361
    %v394 = vunpack.c.l.b16 %v362
    %v395 = vunpack.c.l.b16 %v363
    %v396 = vunpack.c.l.b16 %v364
    %v397 = vunpack.c.l.b16 %v365
    %v398 = vunpack.c.l.b16 %v366
    %v399 = vpack.c.b16 %v384, %v383
    %v400 = vpack.c.b16 %v386, %v385
    %v401 = vpack.c.b16 %v388, %v387
    %v402 = vpack.c.b16 %v390, %v389
    %v403 = vpack.c.b16 %v392, %v391
    %v404 = vpack.c.b16 %v394, %v393
    %v405 = vpack.c.b16 %v396, %v395
    %v406 = vpack.c.b16 %v398, %v397
    %415 = vmatpush.bf16.msra.mxu0 %v406
    %416 = vmatpush.bf16.msra.mxu0 %v405
    %417 = vmatpush.bf16.msra.mxu0 %v404
    %418 = vmatpush.bf16.msra.mxu0 %v403
    %419 = vmatpush.bf16.msra.mxu0 %v402
    %420 = vmatpush.bf16.msra.mxu0 %v401
    %421 = vmatpush.bf16.msra.mxu0 %v400
    %422 = vmatpush.bf16.msra.mxu0 %v399
    %423 = vmatmul.bf16.gmra.mxu0 %v350
    %v424 = vpop.f32.mrf.mxu0
    %v425 = vadd.f32 0.0, %v424
    %v426 = vpop.f32.mrf.mxu0
    %427 = vdwg.mxu0
    %v428 = vadd.f32 %v349, %v425
    %v429 = vmul.f32 %v318, 0.8
    %v430 = vmax.f32 %v428, 0.0
    %v431 = vmul.f32 %v430, 0.2
    %v432 = vadd.f32 %v429, %v431
    %s433 = scalar_lea.vmem [#allocation11], 16
    %434 = vst [vmem:[%s433] sm:$0xff] %v432
    %s435 = scalar_lea.vmem [#allocation3], 12
    %v436 = vld [vmem:[%s435] sm:$0xf]
    %v437 = vld [vmem:[#allocation6] sm:$0xf]
    %v438 = vld [vmem:[#allocation6 + $0x4] sm:$0xf]
    %v441 = vunpack.c.l.b16 %v437
    %v442 = vunpack.c.l.b16 %v438
    %v443 = vpack.c.b16 %v442, %v441
    %v446 = vsel %vm104, %v436, 0
    %448 = vmatpush.bf16.msra.mxu0 0
    %449 = vmatpush.bf16.msra.mxu0 0
    %450 = vmatpush.bf16.msra.mxu0 0
    %451 = vmatpush.bf16.msra.mxu0 0
    %452 = vmatpush.bf16.msra.mxu0 0
    %453 = vmatpush.bf16.msra.mxu0 0
    %454 = vmatpush.bf16.msra.mxu0 0
    %455 = vmatpush.bf16.msra.mxu0 %v443
    %456 = vmatmul.bf16.gmra.mxu0 %v446
    %v457 = vpop.f32.mrf.mxu0
    %v458 = vadd.f32 %v96, %v457
    %v459 = vpop.f32.mrf.mxu0
    %460 = vdwg.mxu0
    %s461 = scalar_lea.vmem [#allocation8], 24
    %v462 = vld [vmem:[%s461] sm:$0xff]
    %v463 = vadd.f32 %v458, %v462
    %v464 = vpack.c.bf16 %v432, %v432
    %v465 = vld [vmem:[#allocation9] sm:$0xf]
    %v466 = vld [vmem:[#allocation9 + $0x4] sm:$0xf]
    %v467 = vld [vmem:[#allocation9 + $0x8] sm:$0xf]
    %v468 = vld [vmem:[#allocation9 + $0xc] sm:$0xf]
    %v469 = vld [vmem:[#allocation9 + $0x10] sm:$0xf]
    %v470 = vld [vmem:[#allocation9 + $0x14] sm:$0xf]
    %v471 = vld [vmem:[#allocation9 + $0x18] sm:$0xf]
    %v472 = vld [vmem:[#allocation9 + $0x1c] sm:$0xf]
    %v473 = vld [vmem:[#allocation9 + $0x20] sm:$0xf]
    %v474 = vld [vmem:[#allocation9 + $0x24] sm:$0xf]
    %v475 = vld [vmem:[#allocation9 + $0x28] sm:$0xf]
    %v476 = vld [vmem:[#allocation9 + $0x2c] sm:$0xf]
    %v477 = vld [vmem:[#allocation9 + $0x30] sm:$0xf]
    %v478 = vld [vmem:[#allocation9 + $0x34] sm:$0xf]
    %v479 = vld [vmem:[#allocation9 + $0x38] sm:$0xf]
    %v480 = vld [vmem:[#allocation9 + $0x3c] sm:$0xf]
    %v497 = vunpack.c.l.b16 %v465
    %v498 = vunpack.c.l.b16 %v466
    %v499 = vunpack.c.l.b16 %v467
    %v500 = vunpack.c.l.b16 %v468
    %v501 = vunpack.c.l.b16 %v469
    %v502 = vunpack.c.l.b16 %v470
    %v503 = vunpack.c.l.b16 %v471
    %v504 = vunpack.c.l.b16 %v472
    %v505 = vunpack.c.l.b16 %v473
    %v506 = vunpack.c.l.b16 %v474
    %v507 = vunpack.c.l.b16 %v475
    %v508 = vunpack.c.l.b16 %v476
    %v509 = vunpack.c.l.b16 %v477
    %v510 = vunpack.c.l.b16 %v478
    %v511 = vunpack.c.l.b16 %v479
    %v512 = vunpack.c.l.b16 %v480
    %v513 = vpack.c.b16 %v498, %v497
    %v514 = vpack.c.b16 %v500, %v499
    %v515 = vpack.c.b16 %v502, %v501
    %v516 = vpack.c.b16 %v504, %v503
    %v517 = vpack.c.b16 %v506, %v505
    %v518 = vpack.c.b16 %v508, %v507
    %v519 = vpack.c.b16 %v510, %v509
    %v520 = vpack.c.b16 %v512, %v511
    %529 = vmatpush.bf16.msra.mxu0 %v520
    %530 = vmatpush.bf16.msra.mxu0 %v519
    %531 = vmatpush.bf16.msra.mxu0 %v518
    %532 = vmatpush.bf16.msra.mxu0 %v517
    %533 = vmatpush.bf16.msra.mxu0 %v516
    %534 = vmatpush.bf16.msra.mxu0 %v515
    %535 = vmatpush.bf16.msra.mxu0 %v514
    %536 = vmatpush.bf16.msra.mxu0 %v513
    %537 = vmatmul.bf16.gmra.mxu0 %v464
    %v538 = vpop.f32.mrf.mxu0
    %v539 = vadd.f32 0.0, %v538
    %v540 = vpop.f32.mrf.mxu0
    %541 = vdwg.mxu0
    %v542 = vadd.f32 %v463, %v539
    %v543 = vmul.f32 %v432, 0.8
    %v544 = vmax.f32 %v542, 0.0
    %v545 = vmul.f32 %v544, 0.2
    %v546 = vadd.f32 %v543, %v545
    %s547 = scalar_lea.vmem [#allocation11], 24
    %548 = vst [vmem:[%s547] sm:$0xff] %v546
    %s549 = scalar_lea.vmem [#allocation3], 16
    %v550 = vld [vmem:[%s549] sm:$0xf]
    %v551 = vld [vmem:[#allocation6] sm:$0xf]
    %v552 = vld [vmem:[#allocation6 + $0x4] sm:$0xf]
    %v555 = vunpack.c.l.b16 %v551
    %v556 = vunpack.c.l.b16 %v552
    %v557 = vpack.c.b16 %v556, %v555
    %v560 = vsel %vm104, %v550, 0
    %562 = vmatpush.bf16.msra.mxu0 0
    %563 = vmatpush.bf16.msra.mxu0 0
    %564 = vmatpush.bf16.msra.mxu0 0
    %565 = vmatpush.bf16.msra.mxu0 0
    %566 = vmatpush.bf16.msra.mxu0 0
    %567 = vmatpush.bf16.msra.mxu0 0
    %568 = vmatpush.bf16.msra.mxu0 0
    %569 = vmatpush.bf16.msra.mxu0 %v557
    %570 = vmatmul.bf16.gmra.mxu0 %v560
    %v571 = vpop.f32.mrf.mxu0
    %v572 = vadd.f32 %v96, %v571
    %v573 = vpop.f32.mrf.mxu0
    %574 = vdwg.mxu0
    %s575 = scalar_lea.vmem [#allocation8], 32
    %v576 = vld [vmem:[%s575] sm:$0xff]
    %v577 = vadd.f32 %v572, %v576
    %v578 = vpack.c.bf16 %v546, %v546
    %v579 = vld [vmem:[#allocation9] sm:$0xf]
    %v580 = vld [vmem:[#allocation9 + $0x4] sm:$0xf]
    %v581 = vld [vmem:[#allocation9 + $0x8] sm:$0xf]
    %v582 = vld [vmem:[#allocation9 + $0xc] sm:$0xf]
    %v583 = vld [vmem:[#allocation9 + $0x10] sm:$0xf]
    %v584 = vld [vmem:[#allocation9 + $0x14] sm:$0xf]
    %v585 = vld [vmem:[#allocation9 + $0x18] sm:$0xf]
    %v586 = vld [vmem:[#allocation9 + $0x1c] sm:$0xf]
    %v587 = vld [vmem:[#allocation9 + $0x20] sm:$0xf]
    %v588 = vld [vmem:[#allocation9 + $0x24] sm:$0xf]
    %v589 = vld [vmem:[#allocation9 + $0x28] sm:$0xf]
    %v590 = vld [vmem:[#allocation9 + $0x2c] sm:$0xf]
    %v591 = vld [vmem:[#allocation9 + $0x30] sm:$0xf]
    %v592 = vld [vmem:[#allocation9 + $0x34] sm:$0xf]
    %v593 = vld [vmem:[#allocation9 + $0x38] sm:$0xf]
    %v594 = vld [vmem:[#allocation9 + $0x3c] sm:$0xf]
    %v611 = vunpack.c.l.b16 %v579
    %v612 = vunpack.c.l.b16 %v580
    %v613 = vunpack.c.l.b16 %v581
    %v614 = vunpack.c.l.b16 %v582
    %v615 = vunpack.c.l.b16 %v583
    %v616 = vunpack.c.l.b16 %v584
    %v617 = vunpack.c.l.b16 %v585
    %v618 = vunpack.c.l.b16 %v586
    %v619 = vunpack.c.l.b16 %v587
    %v620 = vunpack.c.l.b16 %v588
    %v621 = vunpack.c.l.b16 %v589
    %v622 = vunpack.c.l.b16 %v590
    %v623 = vunpack.c.l.b16 %v591
    %v624 = vunpack.c.l.b16 %v592
    %v625 = vunpack.c.l.b16 %v593
    %v626 = vunpack.c.l.b16 %v594
    %v627 = vpack.c.b16 %v612, %v611
    %v628 = vpack.c.b16 %v614, %v613
    %v629 = vpack.c.b16 %v616, %v615
    %v630 = vpack.c.b16 %v618, %v617
    %v631 = vpack.c.b16 %v620, %v619
    %v632 = vpack.c.b16 %v622, %v621
    %v633 = vpack.c.b16 %v624, %v623
    %v634 = vpack.c.b16 %v626, %v625
    %643 = vmatpush.bf16.msra.mxu0 %v634
    %644 = vmatpush.bf16.msra.mxu0 %v633
    %645 = vmatpush.bf16.msra.mxu0 %v632
    %646 = vmatpush.bf16.msra.mxu0 %v631
    %647 = vmatpush.bf16.msra.mxu0 %v630
    %648 = vmatpush.bf16.msra.mxu0 %v629
    %649 = vmatpush.bf16.msra.mxu0 %v628
    %650 = vmatpush.bf16.msra.mxu0 %v627
    %651 = vmatmul.bf16.gmra.mxu0 %v578
    %v652 = vpop.f32.mrf.mxu0
    %v653 = vadd.f32 0.0, %v652
    %v654 = vpop.f32.mrf.mxu0
    %655 = vdwg.mxu0
    %v656 = vadd.f32 %v577, %v653
    %v657 = vmul.f32 %v546, 0.8
    %v658 = vmax.f32 %v656, 0.0
    %v659 = vmul.f32 %v658, 0.2
    %v660 = vadd.f32 %v657, %v659
    %s661 = scalar_lea.vmem [#allocation11], 32
    %662 = vst [vmem:[%s661] sm:$0xff] %v660
    %s663 = scalar_lea.vmem [#allocation3], 20
    %v664 = vld [vmem:[%s663] sm:$0xf]
    %v665 = vld [vmem:[#allocation6] sm:$0xf]
    %v666 = vld [vmem:[#allocation6 + $0x4] sm:$0xf]
    %v669 = vunpack.c.l.b16 %v665
    %v670 = vunpack.c.l.b16 %v666
    %v671 = vpack.c.b16 %v670, %v669
    %v674 = vsel %vm104, %v664, 0
    %676 = vmatpush.bf16.msra.mxu0 0
    %677 = vmatpush.bf16.msra.mxu0 0
    %678 = vmatpush.bf16.msra.mxu0 0
    %679 = vmatpush.bf16.msra.mxu0 0
    %680 = vmatpush.bf16.msra.mxu0 0
    %681 = vmatpush.bf16.msra.mxu0 0
    %682 = vmatpush.bf16.msra.mxu0 0
    %683 = vmatpush.bf16.msra.mxu0 %v671
    %684 = vmatmul.bf16.gmra.mxu0 %v674
    %v685 = vpop.f32.mrf.mxu0
    %v686 = vadd.f32 %v96, %v685
    %v687 = vpop.f32.mrf.mxu0
    %688 = vdwg.mxu0
    %s689 = scalar_lea.vmem [#allocation8], 40
    %v690 = vld [vmem:[%s689] sm:$0xff]
    %v691 = vadd.f32 %v686, %v690
    %v692 = vpack.c.bf16 %v660, %v660
    %v693 = vld [vmem:[#allocation9] sm:$0xf]
    %v694 = vld [vmem:[#allocation9 + $0x4] sm:$0xf]
    %v695 = vld [vmem:[#allocation9 + $0x8] sm:$0xf]
    %v696 = vld [vmem:[#allocation9 + $0xc] sm:$0xf]
    %v697 = vld [vmem:[#allocation9 + $0x10] sm:$0xf]
    %v698 = vld [vmem:[#allocation9 + $0x14] sm:$0xf]
    %v699 = vld [vmem:[#allocation9 + $0x18] sm:$0xf]
    %v700 = vld [vmem:[#allocation9 + $0x1c] sm:$0xf]
    %v701 = vld [vmem:[#allocation9 + $0x20] sm:$0xf]
    %v702 = vld [vmem:[#allocation9 + $0x24] sm:$0xf]
    %v703 = vld [vmem:[#allocation9 + $0x28] sm:$0xf]
    %v704 = vld [vmem:[#allocation9 + $0x2c] sm:$0xf]
    %v705 = vld [vmem:[#allocation9 + $0x30] sm:$0xf]
    %v706 = vld [vmem:[#allocation9 + $0x34] sm:$0xf]
    %v707 = vld [vmem:[#allocation9 + $0x38] sm:$0xf]
    %v708 = vld [vmem:[#allocation9 + $0x3c] sm:$0xf]
    %v725 = vunpack.c.l.b16 %v693
    %v726 = vunpack.c.l.b16 %v694
    %v727 = vunpack.c.l.b16 %v695
    %v728 = vunpack.c.l.b16 %v696
    %v729 = vunpack.c.l.b16 %v697
    %v730 = vunpack.c.l.b16 %v698
    %v731 = vunpack.c.l.b16 %v699
    %v732 = vunpack.c.l.b16 %v700
    %v733 = vunpack.c.l.b16 %v701
    %v734 = vunpack.c.l.b16 %v702
    %v735 = vunpack.c.l.b16 %v703
    %v736 = vunpack.c.l.b16 %v704
    %v737 = vunpack.c.l.b16 %v705
    %v738 = vunpack.c.l.b16 %v706
    %v739 = vunpack.c.l.b16 %v707
    %v740 = vunpack.c.l.b16 %v708
    %v741 = vpack.c.b16 %v726, %v725
    %v742 = vpack.c.b16 %v728, %v727
    %v743 = vpack.c.b16 %v730, %v729
    %v744 = vpack.c.b16 %v732, %v731
    %v745 = vpack.c.b16 %v734, %v733
    %v746 = vpack.c.b16 %v736, %v735
    %v747 = vpack.c.b16 %v738, %v737
    %v748 = vpack.c.b16 %v740, %v739
    %757 = vmatpush.bf16.msra.mxu0 %v748
    %758 = vmatpush.bf16.msra.mxu0 %v747
    %759 = vmatpush.bf16.msra.mxu0 %v746
    %760 = vmatpush.bf16.msra.mxu0 %v745
    %761 = vmatpush.bf16.msra.mxu0 %v744
    %762 = vmatpush.bf16.msra.mxu0 %v743
    %763 = vmatpush.bf16.msra.mxu0 %v742
    %764 = vmatpush.bf16.msra.mxu0 %v741
    %765 = vmatmul.bf16.gmra.mxu0 %v692
    %v766 = vpop.f32.mrf.mxu0
    %v767 = vadd.f32 0.0, %v766
    %v768 = vpop.f32.mrf.mxu0
    %769 = vdwg.mxu0
    %v770 = vadd.f32 %v691, %v767
    %v771 = vmul.f32 %v660, 0.8
    %v772 = vmax.f32 %v770, 0.0
    %v773 = vmul.f32 %v772, 0.2
    %v774 = vadd.f32 %v771, %v773
    %s775 = scalar_lea.vmem [#allocation11], 40
    %776 = vst [vmem:[%s775] sm:$0xff] %v774
    %s777 = scalar_lea.vmem [#allocation3], 24
    %v778 = vld [vmem:[%s777] sm:$0xf]
    %v779 = vld [vmem:[#allocation6] sm:$0xf]
    %v780 = vld [vmem:[#allocation6 + $0x4] sm:$0xf]
    %v783 = vunpack.c.l.b16 %v779
    %v784 = vunpack.c.l.b16 %v780
    %v785 = vpack.c.b16 %v784, %v783
    %v788 = vsel %vm104, %v778, 0
    %790 = vmatpush.bf16.msra.mxu0 0
    %791 = vmatpush.bf16.msra.mxu0 0
    %792 = vmatpush.bf16.msra.mxu0 0
    %793 = vmatpush.bf16.msra.mxu0 0
    %794 = vmatpush.bf16.msra.mxu0 0
    %795 = vmatpush.bf16.msra.mxu0 0
    %796 = vmatpush.bf16.msra.mxu0 0
    %797 = vmatpush.bf16.msra.mxu0 %v785
    %798 = vmatmul.bf16.gmra.mxu0 %v788
    %v799 = vpop.f32.mrf.mxu0
    %v800 = vadd.f32 %v96, %v799
    %v801 = vpop.f32.mrf.mxu0
    %802 = vdwg.mxu0
    %s803 = scalar_lea.vmem [#allocation8], 48
    %v804 = vld [vmem:[%s803] sm:$0xff]
    %v805 = vadd.f32 %v800, %v804
    %v806 = vpack.c.bf16 %v774, %v774
    %v807 = vld [vmem:[#allocation9] sm:$0xf]
    %v808 = vld [vmem:[#allocation9 + $0x4] sm:$0xf]
    %v809 = vld [vmem:[#allocation9 + $0x8] sm:$0xf]
    %v810 = vld [vmem:[#allocation9 + $0xc] sm:$0xf]
    %v811 = vld [vmem:[#allocation9 + $0x10] sm:$0xf]
    %v812 = vld [vmem:[#allocation9 + $0x14] sm:$0xf]
    %v813 = vld [vmem:[#allocation9 + $0x18] sm:$0xf]
    %v814 = vld [vmem:[#allocation9 + $0x1c] sm:$0xf]
    %v815 = vld [vmem:[#allocation9 + $0x20] sm:$0xf]
    %v816 = vld [vmem:[#allocation9 + $0x24] sm:$0xf]
    %v817 = vld [vmem:[#allocation9 + $0x28] sm:$0xf]
    %v818 = vld [vmem:[#allocation9 + $0x2c] sm:$0xf]
    %v819 = vld [vmem:[#allocation9 + $0x30] sm:$0xf]
    %v820 = vld [vmem:[#allocation9 + $0x34] sm:$0xf]
    %v821 = vld [vmem:[#allocation9 + $0x38] sm:$0xf]
    %v822 = vld [vmem:[#allocation9 + $0x3c] sm:$0xf]
    %v839 = vunpack.c.l.b16 %v807
    %v840 = vunpack.c.l.b16 %v808
    %v841 = vunpack.c.l.b16 %v809
    %v842 = vunpack.c.l.b16 %v810
    %v843 = vunpack.c.l.b16 %v811
    %v844 = vunpack.c.l.b16 %v812
    %v845 = vunpack.c.l.b16 %v813
    %v846 = vunpack.c.l.b16 %v814
    %v847 = vunpack.c.l.b16 %v815
    %v848 = vunpack.c.l.b16 %v816
    %v849 = vunpack.c.l.b16 %v817
    %v850 = vunpack.c.l.b16 %v818
    %v851 = vunpack.c.l.b16 %v819
    %v852 = vunpack.c.l.b16 %v820
    %v853 = vunpack.c.l.b16 %v821
    %v854 = vunpack.c.l.b16 %v822
    %v855 = vpack.c.b16 %v840, %v839
    %v856 = vpack.c.b16 %v842, %v841
    %v857 = vpack.c.b16 %v844, %v843
    %v858 = vpack.c.b16 %v846, %v845
    %v859 = vpack.c.b16 %v848, %v847
    %v860 = vpack.c.b16 %v850, %v849
    %v861 = vpack.c.b16 %v852, %v851
    %v862 = vpack.c.b16 %v854, %v853
    %871 = vmatpush.bf16.msra.mxu0 %v862
    %872 = vmatpush.bf16.msra.mxu0 %v861
    %873 = vmatpush.bf16.msra.mxu0 %v860
    %874 = vmatpush.bf16.msra.mxu0 %v859
    %875 = vmatpush.bf16.msra.mxu0 %v858
    %876 = vmatpush.bf16.msra.mxu0 %v857
    %877 = vmatpush.bf16.msra.mxu0 %v856
    %878 = vmatpush.bf16.msra.mxu0 %v855
    %879 = vmatmul.bf16.gmra.mxu0 %v806
    %v880 = vpop.f32.mrf.mxu0
    %v881 = vadd.f32 0.0, %v880
    %v882 = vpop.f32.mrf.mxu0
    %883 = vdwg.mxu0
    %v884 = vadd.f32 %v805, %v881
    %v885 = vmul.f32 %v774, 0.8
    %v886 = vmax.f32 %v884, 0.0
    %v887 = vmul.f32 %v886, 0.2
    %v888 = vadd.f32 %v885, %v887
    %s889 = scalar_lea.vmem [#allocation11], 48
    %890 = vst [vmem:[%s889] sm:$0xff] %v888
    %s891 = scalar_lea.vmem [#allocation3], 28
    %v892 = vld [vmem:[%s891] sm:$0xf]
    %v893 = vld [vmem:[#allocation6] sm:$0xf]
    %v894 = vld [vmem:[#allocation6 + $0x4] sm:$0xf]
    %v897 = vunpack.c.l.b16 %v893
    %v898 = vunpack.c.l.b16 %v894
    %v899 = vpack.c.b16 %v898, %v897
    %v902 = vsel %vm104, %v892, 0
    %904 = vmatpush.bf16.msra.mxu0 0
    %905 = vmatpush.bf16.msra.mxu0 0
    %906 = vmatpush.bf16.msra.mxu0 0
    %907 = vmatpush.bf16.msra.mxu0 0
    %908 = vmatpush.bf16.msra.mxu0 0
    %909 = vmatpush.bf16.msra.mxu0 0
    %910 = vmatpush.bf16.msra.mxu0 0
    %911 = vmatpush.bf16.msra.mxu0 %v899
    %912 = vmatmul.bf16.gmra.mxu0 %v902
    %v913 = vpop.f32.mrf.mxu0
    %v914 = vadd.f32 %v96, %v913
    %v915 = vpop.f32.mrf.mxu0
    %916 = vdwg.mxu0
    %s917 = scalar_lea.vmem [#allocation8], 56
    %v918 = vld [vmem:[%s917] sm:$0xff]
    %v919 = vadd.f32 %v914, %v918
    %v920 = vpack.c.bf16 %v888, %v888
    %v921 = vld [vmem:[#allocation9] sm:$0xf]
    %v922 = vld [vmem:[#allocation9 + $0x4] sm:$0xf]
    %v923 = vld [vmem:[#allocation9 + $0x8] sm:$0xf]
    %v924 = vld [vmem:[#allocation9 + $0xc] sm:$0xf]
    %v925 = vld [vmem:[#allocation9 + $0x10] sm:$0xf]
    %v926 = vld [vmem:[#allocation9 + $0x14] sm:$0xf]
    %v927 = vld [vmem:[#allocation9 + $0x18] sm:$0xf]
    %v928 = vld [vmem:[#allocation9 + $0x1c] sm:$0xf]
    %v929 = vld [vmem:[#allocation9 + $0x20] sm:$0xf]
    %v930 = vld [vmem:[#allocation9 + $0x24] sm:$0xf]
    %v931 = vld [vmem:[#allocation9 + $0x28] sm:$0xf]
    %v932 = vld [vmem:[#allocation9 + $0x2c] sm:$0xf]
    %v933 = vld [vmem:[#allocation9 + $0x30] sm:$0xf]
    %v934 = vld [vmem:[#allocation9 + $0x34] sm:$0xf]
    %v935 = vld [vmem:[#allocation9 + $0x38] sm:$0xf]
    %v936 = vld [vmem:[#allocation9 + $0x3c] sm:$0xf]
    %v953 = vunpack.c.l.b16 %v921
    %v954 = vunpack.c.l.b16 %v922
    %v955 = vunpack.c.l.b16 %v923
    %v956 = vunpack.c.l.b16 %v924
    %v957 = vunpack.c.l.b16 %v925
    %v958 = vunpack.c.l.b16 %v926
    %v959 = vunpack.c.l.b16 %v927
    %v960 = vunpack.c.l.b16 %v928
    %v961 = vunpack.c.l.b16 %v929
    %v962 = vunpack.c.l.b16 %v930
    %v963 = vunpack.c.l.b16 %v931
    %v964 = vunpack.c.l.b16 %v932
    %v965 = vunpack.c.l.b16 %v933
    %v966 = vunpack.c.l.b16 %v934
    %v967 = vunpack.c.l.b16 %v935
    %v968 = vunpack.c.l.b16 %v936
    %v969 = vpack.c.b16 %v954, %v953
    %v970 = vpack.c.b16 %v956, %v955
    %v971 = vpack.c.b16 %v958, %v957
    %v972 = vpack.c.b16 %v960, %v959
    %v973 = vpack.c.b16 %v962, %v961
    %v974 = vpack.c.b16 %v964, %v963
    %v975 = vpack.c.b16 %v966, %v965
    %v976 = vpack.c.b16 %v968, %v967
    %985 = vmatpush.bf16.msra.mxu0 %v976
    %986 = vmatpush.bf16.msra.mxu0 %v975
    %987 = vmatpush.bf16.msra.mxu0 %v974
    %988 = vmatpush.bf16.msra.mxu0 %v973
    %989 = vmatpush.bf16.msra.mxu0 %v972
    %990 = vmatpush.bf16.msra.mxu0 %v971
    %991 = vmatpush.bf16.msra.mxu0 %v970
    %992 = vmatpush.bf16.msra.mxu0 %v969
    %993 = vmatmul.bf16.gmra.mxu0 %v920
    %v994 = vpop.f32.mrf.mxu0
    %v995 = vadd.f32 0.0, %v994
    %v996 = vpop.f32.mrf.mxu0
    %997 = vdwg.mxu0
    %v998 = vadd.f32 %v919, %v995
    %v999 = vmul.f32 %v888, 0.8
    %v1000 = vmax.f32 %v998, 0.0
    %v1001 = vmul.f32 %v1000, 0.2
    %v1002 = vadd.f32 %v999, %v1001
    %s1003 = scalar_lea.vmem [#allocation11], 56
    %1004 = vst [vmem:[%s1003] sm:$0xff] %v1002
    %1005 = vst [vmem:[#allocation2] sm:$0xff] %v1002
    // Predicated region
    $region42: #{tpu_custom_call.1} parent=1 // pred_check
      _
    $region43: #{tpu_custom_call.1} parent=1 // pred_check_branch
      %1007 = sbr.rel (0) target = $region45
    $region44: #{tpu_custom_call.1} parent=1 // pred_region
      %1009 = vsyncadd [#allocation5], 0
      %s1010 = sshll.u32 [#allocation11], 4
      %s1011 = int_to_ptr.vmem [resolvable:$true] %s1010
      %s1012 = sshll.u32 %s5, 4
      %s1013 = int_to_ptr.hbm [resolvable:$true] %s1012
      %1018 = dma.vmem_to_hbm [thread:$0]  %s1011, 1024, %s1013, [#allocation5], 128, 128, 8
    $region45: #{tpu_custom_call.1} parent=1 // pred_fallthru
      _
    // Predicated region
    $region46: #{tpu_custom_call.1} parent=1 // pred_check
      _
    $region47: #{tpu_custom_call.1} parent=1 // pred_check_branch
      %1020 = sbr.rel (0) target = $region49
    $region48: #{tpu_custom_call.1} parent=1 // pred_region
      %1022 = dma.done [#allocation5], 1024
    $region49: #{tpu_custom_call.1} parent=1 // pred_fallthru
      _
    %1023 = vsyncpa [#allocation4], 1
    %1024 = vsyncpa [#allocation7], 1
    %1025 = vsyncpa [#allocation10], 1
    %1026 = vsyncpa [#allocation5], 1

</llo_original>
